<compile_context>
chip_gen: v5e
topology: v5e:2x2
jax: 0.10.0
libtpu: 0.0.40
codegen_flags: <defaults>
</compile_context>

<pallas_src>
import jax
import jax.numpy as jnp
from jax.experimental import pallas as pl
from jax.experimental.pallas import tpu as pltpu

LANE = 128


def _round_up(x, m):
    return ((x + m - 1) // m) * m


# --------------------------------------------------------------------------
# Kernel: whole MLP for one batch tile (intermediates never touch HBM).
# --------------------------------------------------------------------------
def net_kernel(x_ref, w1_ref, b1_ref, w2_ref, b2_ref, wh_ref, bh_ref, head_ref):
    # x arrives as raw f32; cast to bf16 only as an MXU operand.
    x = x_ref[...].astype(jnp.bfloat16)
    # fc1 -> relu (bf16 operands, f32 MXU accumulation, f32 elementwise)
    h1 = jnp.dot(x, w1_ref[...], preferred_element_type=jnp.float32)
    h1 = jnp.maximum(h1 + b1_ref[...], 0.0)
    # fc2 -> relu
    h2 = jnp.dot(h1.astype(jnp.bfloat16), w2_ref[...],
                 preferred_element_type=jnp.float32)
    h2 = jnp.maximum(h2 + b2_ref[...], 0.0)
    # fused critic|actor head -> narrow (tile_b, n_head) store
    head_ref[...] = (
        jnp.dot(h2.astype(jnp.bfloat16), wh_ref[...],
                preferred_element_type=jnp.float32)
        + bh_ref[...]
    )


# --------------------------------------------------------------------------
# Parameter prep: pad hidden dim to 128 lanes, fuse heads, cast to bf16.
# The head is kept narrow (round_up(1+n_out, 8)) to minimise output writeback.
# --------------------------------------------------------------------------
def prepare_params(params):
    """params: f32 (in, out) weights / (out,) biases as produced by init_params."""
    w1, b1, w2, b2, wa, ba, wc, bc = params
    n_in, n_mid = w1.shape
    n_out = wa.shape[1]
    n_mid_p = _round_up(n_mid, LANE)
    n_head = _round_up(1 + n_out, 8)   # column 0 = critic, 1:1+n_out = actor

    def pad2(w, r, c):
        return jnp.zeros((r, c), jnp.float32).at[: w.shape[0], : w.shape[1]].set(w)

    # K dim of W1 is left at n_in so it matches the raw (unpadded) x.
    w1p = pad2(w1, n_in, n_mid_p).astype(jnp.bfloat16)
    b1p = jnp.zeros((1, n_mid_p), jnp.float32).at[0, :n_mid].set(b1)
    w2p = pad2(w2, n_mid_p, n_mid_p).astype(jnp.bfloat16)
    b2p = jnp.zeros((1, n_mid_p), jnp.float32).at[0, :n_mid].set(b2)

    wh = jnp.concatenate([wc, wa], axis=1)     # (n_mid, 1 + n_out)
    bh = jnp.concatenate([bc, ba], axis=0)     # (1 + n_out,)
    whp = pad2(wh, n_mid_p, n_head).astype(jnp.bfloat16)
    bhp = jnp.zeros((1, n_head), jnp.float32).at[0, : 1 + n_out].set(bh)
    return (w1p, b1p, w2p, b2p, whp, bhp)


# --------------------------------------------------------------------------
# Wrapper: batch-tiled pallas_call; weights stay VMEM-resident across tiles.
# --------------------------------------------------------------------------
def net_forward(x, padded_params, n_out, *, tile_b=1024):
    w1, b1, w2, b2, wh, bh = padded_params
    x = x.astype(jnp.float32)
    B, n_in = x.shape
    n_mid_p = w1.shape[1]
    n_head = wh.shape[1]

    # Batch tiling (no padded copy of x, no padded output rows kept):
    #  * tiny batch: one block whose dims equal the full array (no OOB at all).
    #  * otherwise: tile_b multiple of 16 (bf16 sublane packing), capped at
    #    ~B/2 so the parallel axis has >= 2 steps (v7x dual TensorCore), last
    #    block over-covers (OOB reads unspecified, OOB writes discarded).
    max_tile = max(16, _round_up(tile_b, 16))
    if B < 32:
        tb = B
    else:
        tb = min(max_tile, _round_up(pl.cdiv(B, 2), 16))
    grid_b = pl.cdiv(B, tb)

    resident = lambda i: (0, 0)  # weights/biases pinned in VMEM across the grid

    flops = 2 * grid_b * tb * (n_in * n_mid_p + n_mid_p * n_mid_p + n_mid_p * n_head)
    bytes_accessed = (
        x.size * 4
        + (w1.size + w2.size + wh.size) * 2
        + (b1.size + b2.size + bh.size) * 4
        + B * n_head * 4
    )

    head = pl.pallas_call(
        net_kernel,
        out_shape=jax.ShapeDtypeStruct((B, n_head), jnp.float32),
        grid_spec=pltpu.PrefetchScalarGridSpec(
            num_scalar_prefetch=0,
            grid=(grid_b,),
            in_specs=[
                pl.BlockSpec((tb, n_in), lambda i: (i, 0)),   # raw f32 x tile
                pl.BlockSpec(w1.shape, resident),
                pl.BlockSpec(b1.shape, resident),
                pl.BlockSpec(w2.shape, resident),
                pl.BlockSpec(b2.shape, resident),
                pl.BlockSpec(wh.shape, resident),
                pl.BlockSpec(bh.shape, resident),
            ],
            out_specs=pl.BlockSpec((tb, n_head), lambda i: (i, 0)),
        ),
        compiler_params=pltpu.CompilerParams(
            dimension_semantics=("parallel",),        # lets v7x use both TCs
            vmem_limit_bytes=32 * 1024 * 1024,        # safe on v5e/v6e/v7x
        ),
        cost_estimate=pl.CostEstimate(
            flops=flops, transcendentals=0, bytes_accessed=bytes_accessed
        ),
    )(x, w1, b1, w2, b2, wh, bh)

    # Wrapper-side split of the fused head (rows are already exactly B).
    critic = head[:, :1]
    actor = head[:, 1 : 1 + n_out]
    return critic, actor


# --------------------------------------------------------------------------
# Synthetic init (matches nn.Linear fan-in init) + references.
# --------------------------------------------------------------------------
def init_params(key, n_in, n_mid, n_out):
    ks = jax.random.split(key, 8)

    def lin(kw, kb, fan_in, fan_out):
        bound = 1.0 / jnp.sqrt(fan_in)
        # stored (in, out) — transposed relative to PyTorch's (out, in)
        w = jax.random.uniform(kw, (fan_in, fan_out), jnp.float32, -bound, bound)
        b = jax.random.uniform(kb, (fan_out,), jnp.float32, -bound, bound)
        return w, b

    w1, b1 = lin(ks[0], ks[1], n_in, n_mid)    # fc1
    w2, b2 = lin(ks[2], ks[3], n_mid, n_mid)   # fc2
    wa, ba = lin(ks[4], ks[5], n_mid, n_out)   # actor
    wc, bc = lin(ks[6], ks[7], n_mid, 1)       # critic
    return (w1, b1, w2, b2, wa, ba, wc, bc)


def net_forward_ref(x, params, *, bf16):
    """Pure-JAX reference; bf16=True mirrors the kernel's operand casts."""
    w1, b1, w2, b2, wa, ba, wc, bc = params
    cast = (lambda a: a.astype(jnp.bfloat16)) if bf16 else (lambda a: a)
    h1 = jnp.maximum(
        jnp.dot(cast(x), cast(w1), preferred_element_type=jnp.float32) + b1, 0.0)
    h2 = jnp.maximum(
        jnp.dot(cast(h1), cast(w2), preferred_element_type=jnp.float32) + b2, 0.0)
    critic = jnp.dot(cast(h2), cast(wc), preferred_element_type=jnp.float32) + bc
    actor = jnp.dot(cast(h2), cast(wa), preferred_element_type=jnp.float32) + ba
    return critic, actor


def _check(x, params, padded, n_out, tile_b=1024):
    critic_out, actor_out = jax.block_until_ready(
        net_forward(x, padded, n_out, tile_b=tile_b))
    B = x.shape[0]
    assert critic_out.shape == (B, 1) and actor_out.shape == (B, n_out)
    # Reference with the same bf16 operand casts (tight) ...
    critic_bf, actor_bf = net_forward_ref(x, params, bf16=True)
    assert jnp.allclose(critic_out, critic_bf, atol=1e-2, rtol=1e-2)
    assert jnp.allclose(actor_out, actor_bf, atol=1e-2, rtol=1e-2)
    # ... and the full-f32 reference (loose: bf16 operands drift ~1e-2).
    critic_f32, actor_f32 = net_forward_ref(x, params, bf16=False)
    assert jnp.allclose(critic_out, critic_f32, atol=5e-2, rtol=5e-2)
    assert jnp.allclose(actor_out, actor_f32, atol=5e-2, rtol=5e-2)


if __name__ == "__main__":
    key = jax.random.PRNGKey(0)
    k_param, k_x1, k_x2 = jax.random.split(key, 3)

    n_in, n_mid, n_out = 16, 32, 4
    params = init_params(k_param, n_in, n_mid, n_out)
    padded = prepare_params(params)

    # Small batch: single full-array block (no padding, no OOB).
    x_small = jax.random.normal(k_x1, (8, n_in), jnp.float32)
    _check(x_small, params, padded, n_out)

    # Ragged batch: 2-step grid, last block over-covers (dead rows discarded).
    x_ragged = jax.random.normal(k_x2, (40, n_in), jnp.float32)
    _check(x_ragged, params, padded, n_out)

    print("KERNEL_OK")
</pallas_src>

<mosaic_0001>
module attributes {stable_mosaic.version = 11 : i64} {
  func.func @net_kernel(%arg0: i32, %arg1: memref<8x16xf32, #tpu.memory_space<vmem>>, %arg2: memref<16x128xbf16, #tpu.memory_space<vmem>>, %arg3: memref<1x128xf32, #tpu.memory_space<vmem>>, %arg4: memref<128x128xbf16, #tpu.memory_space<vmem>>, %arg5: memref<1x128xf32, #tpu.memory_space<vmem>>, %arg6: memref<128x8xbf16, #tpu.memory_space<vmem>>, %arg7: memref<1x8xf32, #tpu.memory_space<vmem>>, %arg8: memref<8x8xf32, #tpu.memory_space<vmem>>) attributes {dimension_semantics = [#tpu.dimension_semantics<parallel>], iteration_bounds = array<i64: 1>, scalar_prefetch = 0 : i64, scratch_operands = 0 : i64, tpu.core_type = #tpu.core_type<tc>, window_params = [{transform_indices = @transform_0, window_bounds = array<i64: 8, 16>}, {pipeline_mode = #tpu.pipeline_mode<synchronous>, transform_indices = @transform_1, window_bounds = array<i64: 16, 128>}, {pipeline_mode = #tpu.pipeline_mode<synchronous>, transform_indices = @transform_2, window_bounds = array<i64: 1, 128>}, {pipeline_mode = #tpu.pipeline_mode<synchronous>, transform_indices = @transform_3, window_bounds = array<i64: 128, 128>}, {pipeline_mode = #tpu.pipeline_mode<synchronous>, transform_indices = @transform_4, window_bounds = array<i64: 1, 128>}, {pipeline_mode = #tpu.pipeline_mode<synchronous>, transform_indices = @transform_5, window_bounds = array<i64: 128, 8>}, {pipeline_mode = #tpu.pipeline_mode<synchronous>, transform_indices = @transform_6, window_bounds = array<i64: 1, 8>}, {transform_indices = @transform_7, window_bounds = array<i64: 8, 8>}]} {
    %c0 = arith.constant 0 : index
    %c0_0 = arith.constant 0 : index
    %0 = vector.load %arg1[%c0, %c0_0] : memref<8x16xf32, #tpu.memory_space<vmem>>, vector<8x16xf32>
    %1 = arith.truncf %0 : vector<8x16xf32> to vector<8x16xbf16>
    %c0_1 = arith.constant 0 : index
    %c0_2 = arith.constant 0 : index
    %2 = vector.load %arg2[%c0_1, %c0_2] : memref<16x128xbf16, #tpu.memory_space<vmem>>, vector<16x128xbf16>
    %cst = arith.constant dense<0.000000e+00> : vector<8x128xf32>
    %3 = tpu.matmul %1, %2, %cst {dimension_numbers = #tpu.dot_dimension_numbers<[1], [0], [0], [1], [0, 0, 1, 1], [], []>} : vector<8x16xbf16>, vector<16x128xbf16>, vector<8x128xf32> -> vector<8x128xf32>
    %c0_3 = arith.constant 0 : index
    %c0_4 = arith.constant 0 : index
    %4 = vector.load %arg3[%c0_3, %c0_4] : memref<1x128xf32, #tpu.memory_space<vmem>>, vector<1x128xf32>
    %5 = vector.broadcast %4 : vector<1x128xf32> to vector<8x128xf32>
    %6 = arith.addf %3, %5 : vector<8x128xf32>
    %cst_5 = arith.constant 0.000000e+00 : f32
    %7 = vector.broadcast %cst_5 : f32 to vector<8x128xf32>
    %8 = arith.maximumf %6, %7 : vector<8x128xf32>
    %9 = arith.truncf %8 : vector<8x128xf32> to vector<8x128xbf16>
    %c0_6 = arith.constant 0 : index
    %c0_7 = arith.constant 0 : index
    %10 = vector.load %arg4[%c0_6, %c0_7] : memref<128x128xbf16, #tpu.memory_space<vmem>>, vector<128x128xbf16>
    %cst_8 = arith.constant dense<0.000000e+00> : vector<8x128xf32>
    %11 = tpu.matmul %9, %10, %cst_8 {dimension_numbers = #tpu.dot_dimension_numbers<[1], [0], [0], [1], [0, 0, 1, 1], [], []>} : vector<8x128xbf16>, vector<128x128xbf16>, vector<8x128xf32> -> vector<8x128xf32>
    %c0_9 = arith.constant 0 : index
    %c0_10 = arith.constant 0 : index
    %12 = vector.load %arg5[%c0_9, %c0_10] : memref<1x128xf32, #tpu.memory_space<vmem>>, vector<1x128xf32>
    %13 = vector.broadcast %12 : vector<1x128xf32> to vector<8x128xf32>
    %14 = arith.addf %11, %13 : vector<8x128xf32>
    %cst_11 = arith.constant 0.000000e+00 : f32
    %15 = vector.broadcast %cst_11 : f32 to vector<8x128xf32>
    %16 = arith.maximumf %14, %15 : vector<8x128xf32>
    %17 = arith.truncf %16 : vector<8x128xf32> to vector<8x128xbf16>
    %c0_12 = arith.constant 0 : index
    %c0_13 = arith.constant 0 : index
    %18 = vector.load %arg6[%c0_12, %c0_13] : memref<128x8xbf16, #tpu.memory_space<vmem>>, vector<128x8xbf16>
    %cst_14 = arith.constant dense<0.000000e+00> : vector<8x8xf32>
    %19 = tpu.matmul %17, %18, %cst_14 {dimension_numbers = #tpu.dot_dimension_numbers<[1], [0], [0], [1], [0, 0, 1, 1], [], []>} : vector<8x128xbf16>, vector<128x8xbf16>, vector<8x8xf32> -> vector<8x8xf32>
    %c0_15 = arith.constant 0 : index
    %c0_16 = arith.constant 0 : index
    %20 = vector.load %arg7[%c0_15, %c0_16] : memref<1x8xf32, #tpu.memory_space<vmem>>, vector<1x8xf32>
    %21 = vector.broadcast %20 : vector<1x8xf32> to vector<8x8xf32>
    %22 = arith.addf %19, %21 : vector<8x8xf32>
    %c0_17 = arith.constant 0 : index
    %c0_18 = arith.constant 0 : index
    %23 = vector.load %arg8[%c0_17, %c0_18] : memref<8x8xf32, #tpu.memory_space<vmem>>, vector<8x8xf32>
    tpu.vector_store %arg8[%c0_17, %c0_18], %22 {strides = array<i32>} : memref<8x8xf32, #tpu.memory_space<vmem>>, vector<8x8xf32>,
    return
  }
  func.func @transform_0(%arg0: i32) -> (i32, i32) {
    %c0_i32 = arith.constant 0 : i32
    %c0_i32_0 = arith.constant 0 : i32
    return %arg0, %c0_i32 : i32, i32
  }
  func.func @transform_1(%arg0: i32) -> (i32, i32) {
    %c0_i32 = arith.constant 0 : i32
    %c0_i32_0 = arith.constant 0 : i32
    %c0_i32_1 = arith.constant 0 : i32
    return %c0_i32, %c0_i32_0 : i32, i32
  }
  func.func @transform_2(%arg0: i32) -> (i32, i32) {
    %c0_i32 = arith.constant 0 : i32
    %c0_i32_0 = arith.constant 0 : i32
    %c0_i32_1 = arith.constant 0 : i32
    return %c0_i32, %c0_i32_0 : i32, i32
  }
  func.func @transform_3(%arg0: i32) -> (i32, i32) {
    %c0_i32 = arith.constant 0 : i32
    %c0_i32_0 = arith.constant 0 : i32
    %c0_i32_1 = arith.constant 0 : i32
    return %c0_i32, %c0_i32_0 : i32, i32
  }
  func.func @transform_4(%arg0: i32) -> (i32, i32) {
    %c0_i32 = arith.constant 0 : i32
    %c0_i32_0 = arith.constant 0 : i32
    %c0_i32_1 = arith.constant 0 : i32
    return %c0_i32, %c0_i32_0 : i32, i32
  }
  func.func @transform_5(%arg0: i32) -> (i32, i32) {
    %c0_i32 = arith.constant 0 : i32
    %c0_i32_0 = arith.constant 0 : i32
    %c0_i32_1 = arith.constant 0 : i32
    return %c0_i32, %c0_i32_0 : i32, i32
  }
  func.func @transform_6(%arg0: i32) -> (i32, i32) {
    %c0_i32 = arith.constant 0 : i32
    %c0_i32_0 = arith.constant 0 : i32
    %c0_i32_1 = arith.constant 0 : i32
    return %c0_i32, %c0_i32_0 : i32, i32
  }
  func.func @transform_7(%arg0: i32) -> (i32, i32) {
    %c0_i32 = arith.constant 0 : i32
    %c0_i32_0 = arith.constant 0 : i32
    return %arg0, %c0_i32 : i32, i32
  }
}

</mosaic_0001>

<llo_original>
// kernel: tpu_custom_call.1
$region0: #{tpu_custom_call.1}
  #allocation0 [shape = 'u32[]', space=smem, size = 0x4, offset = 0x4, fixed_abs, tag = 'smem constant byte address 0x4 - core index']
  #allocation1 [shape = 'u32[72,128]{1,0:T(1,128)}', space=vmem, size = 0x9000, scoped, tag = 'internal scratch']
  %s0 = inlined_call_operand.hbm [shape: f32[8,16], index: 0, kind: input, shape index: {}]
  %s1 = inlined_call_operand.hbm [shape: bf16[16,128], index: 1, kind: input, shape index: {}]
  %s2 = inlined_call_operand.vmem [shape: f32[1,128], index: 2, kind: input, shape index: {}]
  %s3 = inlined_call_operand.vmem [shape: bf16[128,128], index: 3, kind: input, shape index: {}]
  %s4 = inlined_call_operand.vmem [shape: f32[1,128], index: 4, kind: input, shape index: {}]
  %s5 = inlined_call_operand.vmem [shape: bf16[128,8], index: 5, kind: input, shape index: {}]
  %s6 = inlined_call_operand.vmem [shape: f32[1,8], index: 6, kind: input, shape index: {}]
  %s7 = inlined_call_operand.hbm [shape: f32[8,8], index: 7, kind: output, shape index: {}]
  %s8 = sld [smem:[#allocation0]]
  $region46: #{tpu_custom_call.1} parent=0
    _
  %s10 = ssub.s32 1, %s8
  %s11 = scalar_select 0, %s10, %s8
  $region1: #{tpu_custom_call.1} parent=0
    #allocation2 [shape = 'u8[4096]{0}', space=vmem, size = 0x1000, scoped, tag = 'input window, operand 0, single buffered']
    #allocation3 [shape = 's32[1]{0}', space=sflag, size = 0x4, scoped, tag = 'scoped memory for tpu_custom_call.1']
    #allocation4 [shape = 's32[1]{0}', space=sflag, size = 0x4, scoped, tag = 'scoped memory for tpu_custom_call.1']
    #allocation5 [shape = 'u8[4096]{0}', space=vmem, size = 0x1000, scoped, tag = 'input window, operand 1, single buffered']
    #allocation6 [shape = 's32[1]{0}', space=sflag, size = 0x4, scoped, tag = 'scoped memory for tpu_custom_call.1']
    #allocation7 [shape = 'u8[4096]{0}', space=vmem, size = 0x1000, scoped, tag = 'output window, operand 0, single buffered']
    %12 = vsyncpa [#allocation3], 0
    %13 = vsyncpa [#allocation6], 0
    %14 = vsyncpa [#allocation4], 0
    // Predicated region
    $region2: #{tpu_custom_call.1} parent=1 // pred_check
      _
    $region3: #{tpu_custom_call.1} parent=1 // pred_check_branch
      %16 = sbr.rel (0) target = $region5
    $region4: #{tpu_custom_call.1} parent=1 // pred_region
      %18 = vsyncadd [#allocation3], 0
      %s20 = sshll.u32 %s0, 4
      %s21 = int_to_ptr.hbm [resolvable:$true] %s20
      %s22 = sshll.u32 [#allocation2], 4
      %s23 = int_to_ptr.vmem [resolvable:$true] %s22
      %25 = dma.hbm_to_vmem [thread:$0]  %s21, 128, %s23, [#allocation3]
    $region5: #{tpu_custom_call.1} parent=1 // pred_fallthru
      _
    // Predicated region
    $region6: #{tpu_custom_call.1} parent=1 // pred_check
      _
    $region7: #{tpu_custom_call.1} parent=1 // pred_check_branch
      %27 = sbr.rel (0) target = $region9
    $region8: #{tpu_custom_call.1} parent=1 // pred_region
      %29 = vsyncadd [#allocation6], 0
      %s30 = sshll.u32 %s1, 4
      %s31 = int_to_ptr.hbm [resolvable:$true] %s30
      %s32 = sshll.u32 [#allocation5], 4
      %s33 = int_to_ptr.vmem [resolvable:$true] %s32
      %38 = dma.hbm_to_vmem [thread:$0]  %s31, 128, %s33, [#allocation6], 64, 64, 4
    $region9: #{tpu_custom_call.1} parent=1 // pred_fallthru
      _
    // Predicated region
    $region10: #{tpu_custom_call.1} parent=1 // pred_check
      _
    $region11: #{tpu_custom_call.1} parent=1 // pred_check_branch
      %40 = sbr.rel (0) target = $region13
    $region12: #{tpu_custom_call.1} parent=1 // pred_region
      _
    $region13: #{tpu_custom_call.1} parent=1 // pred_fallthru
      _
    // Predicated region
    $region14: #{tpu_custom_call.1} parent=1 // pred_check
      _
    $region15: #{tpu_custom_call.1} parent=1 // pred_check_branch
      %42 = sbr.rel (0) target = $region17
    $region16: #{tpu_custom_call.1} parent=1 // pred_region
      _
    $region17: #{tpu_custom_call.1} parent=1 // pred_fallthru
      _
    // Predicated region
    $region18: #{tpu_custom_call.1} parent=1 // pred_check
      _
    $region19: #{tpu_custom_call.1} parent=1 // pred_check_branch
      %44 = sbr.rel (0) target = $region21
    $region20: #{tpu_custom_call.1} parent=1 // pred_region
      _
    $region21: #{tpu_custom_call.1} parent=1 // pred_fallthru
      _
    // Predicated region
    $region22: #{tpu_custom_call.1} parent=1 // pred_check
      _
    $region23: #{tpu_custom_call.1} parent=1 // pred_check_branch
      %46 = sbr.rel (0) target = $region25
    $region24: #{tpu_custom_call.1} parent=1 // pred_region
      _
    $region25: #{tpu_custom_call.1} parent=1 // pred_fallthru
      _
    // Predicated region
    $region26: #{tpu_custom_call.1} parent=1 // pred_check
      _
    $region27: #{tpu_custom_call.1} parent=1 // pred_check_branch
      %48 = sbr.rel (0) target = $region29
    $region28: #{tpu_custom_call.1} parent=1 // pred_region
      _
    $region29: #{tpu_custom_call.1} parent=1 // pred_fallthru
      _
    // Predicated region
    $region30: #{tpu_custom_call.1} parent=1 // pred_check
      _
    $region31: #{tpu_custom_call.1} parent=1 // pred_check_branch
      %50 = sbr.rel (0) target = $region33
    $region32: #{tpu_custom_call.1} parent=1 // pred_region
      %52 = dma.done [#allocation3], 128
    $region33: #{tpu_custom_call.1} parent=1 // pred_fallthru
      _
    // Predicated region
    $region34: #{tpu_custom_call.1} parent=1 // pred_check
      _
    $region35: #{tpu_custom_call.1} parent=1 // pred_check_branch
      %54 = sbr.rel (0) target = $region37
    $region36: #{tpu_custom_call.1} parent=1 // pred_region
      %56 = dma.done [#allocation6], 128
    $region37: #{tpu_custom_call.1} parent=1 // pred_fallthru
      _
    %v58 = vld [vmem:[#allocation2] sm:$0xff]
    %v59 = vpack.c.bf16 %v58, %v58
    %v60 = vld [vmem:[#allocation5] sm:$0xf]
    %v61 = vld [vmem:[#allocation5 + $0x4] sm:$0xf]
    %v62 = vld [vmem:[%s2] sm:$0x1]
    %v64 = vperm.slane %v62, 0
    %v68 = vunpack.c.l.b16 %v60
    %v69 = vunpack.c.l.b16 %v61
    %v70 = vpack.c.b16 %v69, %v68
    %vm72 = vcmask 130048
    %v74 = vsel %vm72, %v59, 0
    %76 = vmatpush.bf16.msra.mxu0 0
    %77 = vmatpush.bf16.msra.mxu0 0
    %78 = vmatpush.bf16.msra.mxu0 0
    %79 = vmatpush.bf16.msra.mxu0 0
    %80 = vmatpush.bf16.msra.mxu0 0
    %81 = vmatpush.bf16.msra.mxu0 0
    %82 = vmatpush.bf16.msra.mxu0 0
    %83 = vmatpush.bf16.msra.mxu0 %v70
    %84 = vmatmul.bf16.gmra.mxu0 %v74
    %v85 = vpop.f32.mrf.mxu0
    %v86 = vadd.f32 %v64, %v85
    %v87 = vpop.f32.mrf.mxu0
    %88 = vdwg.mxu0
    %v89 = vmax.f32 %v86, 0.0
    %v90 = vpack.c.bf16 %v89, %v89
    %v91 = vld [vmem:[%s3] sm:$0xf]
    %v92 = vld [vmem:[%s3 + $0x4] sm:$0xf]
    %v93 = vld [vmem:[%s3 + $0x8] sm:$0xf]
    %v94 = vld [vmem:[%s3 + $0xc] sm:$0xf]
    %v95 = vld [vmem:[%s3 + $0x10] sm:$0xf]
    %v96 = vld [vmem:[%s3 + $0x14] sm:$0xf]
    %v97 = vld [vmem:[%s3 + $0x18] sm:$0xf]
    %v98 = vld [vmem:[%s3 + $0x1c] sm:$0xf]
    %v99 = vld [vmem:[%s3 + $0x20] sm:$0xf]
    %v100 = vld [vmem:[%s3 + $0x24] sm:$0xf]
    %v101 = vld [vmem:[%s3 + $0x28] sm:$0xf]
    %v102 = vld [vmem:[%s3 + $0x2c] sm:$0xf]
    %v103 = vld [vmem:[%s3 + $0x30] sm:$0xf]
    %v104 = vld [vmem:[%s3 + $0x34] sm:$0xf]
    %v105 = vld [vmem:[%s3 + $0x38] sm:$0xf]
    %v106 = vld [vmem:[%s3 + $0x3c] sm:$0xf]
    %v107 = vld [vmem:[%s4] sm:$0x1]
    %v109 = vperm.slane %v107, 0
    %v127 = vunpack.c.l.b16 %v91
    %v128 = vunpack.c.l.b16 %v92
    %v129 = vunpack.c.l.b16 %v93
    %v130 = vunpack.c.l.b16 %v94
    %v131 = vunpack.c.l.b16 %v95
    %v132 = vunpack.c.l.b16 %v96
    %v133 = vunpack.c.l.b16 %v97
    %v134 = vunpack.c.l.b16 %v98
    %v135 = vunpack.c.l.b16 %v99
    %v136 = vunpack.c.l.b16 %v100
    %v137 = vunpack.c.l.b16 %v101
    %v138 = vunpack.c.l.b16 %v102
    %v139 = vunpack.c.l.b16 %v103
    %v140 = vunpack.c.l.b16 %v104
    %v141 = vunpack.c.l.b16 %v105
    %v142 = vunpack.c.l.b16 %v106
    %v143 = vpack.c.b16 %v128, %v127
    %v144 = vpack.c.b16 %v130, %v129
    %v145 = vpack.c.b16 %v132, %v131
    %v146 = vpack.c.b16 %v134, %v133
    %v147 = vpack.c.b16 %v136, %v135
    %v148 = vpack.c.b16 %v138, %v137
    %v149 = vpack.c.b16 %v140, %v139
    %v150 = vpack.c.b16 %v142, %v141
    %159 = vmatpush.bf16.msra.mxu0 %v150
    %160 = vmatpush.bf16.msra.mxu0 %v149
    %161 = vmatpush.bf16.msra.mxu0 %v148
    %162 = vmatpush.bf16.msra.mxu0 %v147
    %163 = vmatpush.bf16.msra.mxu0 %v146
    %164 = vmatpush.bf16.msra.mxu0 %v145
    %165 = vmatpush.bf16.msra.mxu0 %v144
    %166 = vmatpush.bf16.msra.mxu0 %v143
    %167 = vmatmul.bf16.gmra.mxu0 %v90
    %v168 = vpop.f32.mrf.mxu0
    %v169 = vadd.f32 %v109, %v168
    %v170 = vpop.f32.mrf.mxu0
    %171 = vdwg.mxu0
    %v172 = vmax.f32 %v169, 0.0
    %v173 = vpack.c.bf16 %v172, %v172
    %v174 = vld [vmem:[%s5] sm:$0xf]
    %v175 = vld [vmem:[%s5 + $0x4] sm:$0xf]
    %v176 = vld [vmem:[%s5 + $0x8] sm:$0xf]
    %v177 = vld [vmem:[%s5 + $0xc] sm:$0xf]
    %v178 = vld [vmem:[%s5 + $0x10] sm:$0xf]
    %v179 = vld [vmem:[%s5 + $0x14] sm:$0xf]
    %v180 = vld [vmem:[%s5 + $0x18] sm:$0xf]
    %v181 = vld [vmem:[%s5 + $0x1c] sm:$0xf]
    %v182 = vld [vmem:[%s5 + $0x20] sm:$0xf]
    %v183 = vld [vmem:[%s5 + $0x24] sm:$0xf]
    %v184 = vld [vmem:[%s5 + $0x28] sm:$0xf]
    %v185 = vld [vmem:[%s5 + $0x2c] sm:$0xf]
    %v186 = vld [vmem:[%s5 + $0x30] sm:$0xf]
    %v187 = vld [vmem:[%s5 + $0x34] sm:$0xf]
    %v188 = vld [vmem:[%s5 + $0x38] sm:$0xf]
    %v189 = vld [vmem:[%s5 + $0x3c] sm:$0xf]
    %v190 = vld [vmem:[%s6] sm:$0x1]
    %v192 = vperm.slane %v190, 0
    %v210 = vunpack.c.l.b16 %v174
    %v211 = vunpack.c.l.b16 %v175
    %v212 = vunpack.c.l.b16 %v176
    %v213 = vunpack.c.l.b16 %v177
    %v214 = vunpack.c.l.b16 %v178
    %v215 = vunpack.c.l.b16 %v179
    %v216 = vunpack.c.l.b16 %v180
    %v217 = vunpack.c.l.b16 %v181
    %v218 = vunpack.c.l.b16 %v182
    %v219 = vunpack.c.l.b16 %v183
    %v220 = vunpack.c.l.b16 %v184
    %v221 = vunpack.c.l.b16 %v185
    %v222 = vunpack.c.l.b16 %v186
    %v223 = vunpack.c.l.b16 %v187
    %v224 = vunpack.c.l.b16 %v188
    %v225 = vunpack.c.l.b16 %v189
    %v226 = vpack.c.b16 %v211, %v210
    %v227 = vpack.c.b16 %v213, %v212
    %v228 = vpack.c.b16 %v215, %v214
    %v229 = vpack.c.b16 %v217, %v216
    %v230 = vpack.c.b16 %v219, %v218
    %v231 = vpack.c.b16 %v221, %v220
    %v232 = vpack.c.b16 %v223, %v222
    %v233 = vpack.c.b16 %v225, %v224
    %242 = vmatpush.bf16.msra.mxu0 %v233
    %243 = vmatpush.bf16.msra.mxu0 %v232
    %244 = vmatpush.bf16.msra.mxu0 %v231
    %245 = vmatpush.bf16.msra.mxu0 %v230
    %246 = vmatpush.bf16.msra.mxu0 %v229
    %247 = vmatpush.bf16.msra.mxu0 %v228
    %248 = vmatpush.bf16.msra.mxu0 %v227
    %249 = vmatpush.bf16.msra.mxu0 %v226
    %250 = vmatmul.bf16.gmra.mxu0 %v173
    %v251 = vpop.f32.mrf.mxu0
    %v252 = vadd.f32 %v192, %v251
    %v253 = vpop.f32.mrf.mxu0
    %254 = vdwg.mxu0
    %vm255 = vcmask 64512
    %256 = vst.msk [vmem:[#allocation7] sm:$0xff] %vm255, %v252
    // Predicated region
    $region38: #{tpu_custom_call.1} parent=1 // pred_check
      _
    $region39: #{tpu_custom_call.1} parent=1 // pred_check_branch
      %258 = sbr.rel (0) target = $region41
    $region40: #{tpu_custom_call.1} parent=1 // pred_region
      %260 = vsyncadd [#allocation4], 0
      %s262 = sshll.u32 [#allocation7], 4
      %s263 = int_to_ptr.vmem [resolvable:$true] %s262
      %s264 = sshll.u32 %s7, 4
      %s265 = int_to_ptr.hbm [resolvable:$true] %s264
      %267 = dma.vmem_to_hbm [thread:$0]  %s263, 128, %s265, [#allocation4]
    $region41: #{tpu_custom_call.1} parent=1 // pred_fallthru
      _
    // Predicated region
    $region42: #{tpu_custom_call.1} parent=1 // pred_check
      _
    $region43: #{tpu_custom_call.1} parent=1 // pred_check_branch
      %269 = sbr.rel (0) target = $region45
    $region44: #{tpu_custom_call.1} parent=1 // pred_region
      %271 = dma.done [#allocation4], 128
    $region45: #{tpu_custom_call.1} parent=1 // pred_fallthru
      _
    %272 = vsyncpa [#allocation3], 1
    %273 = vsyncpa [#allocation6], 1
    %274 = vsyncpa [#allocation4], 1

</llo_original>
